<compile_context>
chip_gen: v7x
topology: tpu7x:2x2x1
jax: 0.10.0
libtpu: 0.0.40
codegen_flags: <defaults>
</compile_context>

<pallas_src>
import jax
import jax.numpy as jnp
from jax.experimental import pallas as pl
from jax.experimental.pallas import tpu as pltpu


# ---------------------------------------------------------------------------
# Kernels
# ---------------------------------------------------------------------------

def _affine_kernel(x_ref, w_ref, b_ref, out_ref):
    # (tB, F) @ (F, 1) + (1, 1): the entire eval-mode MLP collapsed.
    out_ref[...] = (
        jnp.dot(x_ref[...], w_ref[...], preferred_element_type=jnp.float32)
        + b_ref[...]
    ).astype(out_ref.dtype)


def _layered_kernel(x_ref,
                    w1_ref, b1_ref,
                    w2_ref, b2_ref,
                    w3_ref, b3_ref,
                    w4_ref, b4_ref,
                    w5_ref, b5_ref,
                    out_ref):
    # Faithful layer-by-layer form.  Weights arrive as bf16 (HBM traffic /2),
    # activations are cast to bf16 right before each MXU dot, accumulation and
    # bias adds stay f32 (preferred_element_type).
    # TODO(synk): Dropout(0.2/0.1) are identity in eval mode; training-mode RNG
    # masks are not implemented.
    def layer(h, w_ref, b_ref):
        return jnp.dot(h.astype(w_ref.dtype), w_ref[...],
                       preferred_element_type=jnp.float32) + b_ref[...]

    h = layer(x_ref[...], w1_ref, b1_ref)
    h = layer(h, w2_ref, b2_ref)
    h = layer(h, w3_ref, b3_ref)
    h = layer(h, w4_ref, b4_ref)
    out_ref[...] = layer(h, w5_ref, b5_ref).astype(out_ref.dtype)


# ---------------------------------------------------------------------------
# Wrapper
# ---------------------------------------------------------------------------

def _round_up(n, m):
    return ((n + m - 1) // m) * m


def fold_affine_params(params):
    """Collapse the activation-free, eval-mode MLP into one affine map."""
    w_eff, b_eff = params[0]
    for w, b in params[1:]:
        w_eff = w_eff @ w
        b_eff = b_eff @ w + b
    return w_eff, b_eff            # (F, 1), (1, 1)


def aesthetic_predictor_forward(x, params, *, block_b=256, collapse=True):
    """x: (B, F) float32; params: list of (W_t, b) with W_t (in, out), b (1, out).

    collapse=True  -> single folded affine kernel (exact for eval mode).
    collapse=False -> faithful 5-layer kernel with bf16 weights, f32 accumulation.
    """
    assert block_b % 8 == 0, "batch tile must be a multiple of 8 (sublanes)"
    B, F = x.shape

    tb = min(block_b, _round_up(B, 8))      # batch tile, multiple of 8
    bp = _round_up(B, tb)                   # padded batch
    if bp != B:
        x = jnp.pad(x, ((0, bp - B), (0, 0)))
    grid = (bp // tb,)

    x_spec = pl.BlockSpec((tb, F), lambda i: (i, 0))
    out_spec = pl.BlockSpec((tb, 1), lambda i: (i, 0))

    def resident(shape):                    # loaded once, VMEM-resident across the grid
        return pl.BlockSpec(shape, lambda i: (0, 0))

    cparams = pltpu.CompilerParams(
        dimension_semantics=("parallel",),  # shard batch axis across TCs (v7x megacore)
        vmem_limit_bytes=32 << 20,          # footprint << 32 MiB; fits v7x's 64 MiB VMEM
    )

    if collapse:
        w_eff, b_eff = fold_affine_params(params)   # one-time, batch-independent fold
        out = pl.pallas_call(
            _affine_kernel,
            out_shape=jax.ShapeDtypeStruct((bp, 1), jnp.float32),
            grid=grid,
            in_specs=[x_spec, resident(w_eff.shape), resident(b_eff.shape)],
            out_specs=out_spec,
            compiler_params=cparams,
        )(x, w_eff, b_eff)
    else:
        flat, in_specs = [x], [x_spec]
        for w, b in params:
            flat += [w.astype(jnp.bfloat16), b]     # bf16 weights, f32 biases
            in_specs += [resident(w.shape), resident(b.shape)]
        out = pl.pallas_call(
            _layered_kernel,
            out_shape=jax.ShapeDtypeStruct((bp, 1), jnp.float32),
            grid=grid,
            in_specs=in_specs,
            out_specs=out_spec,
            compiler_params=cparams,
        )(*flat)

    return out[:B]


# ---------------------------------------------------------------------------
# Parameters / reference
# ---------------------------------------------------------------------------

def init_params(key, input_size):
    """Deterministic synthetic parameters matching nn.Linear shapes.

    PyTorch Linear(in, out) has W: (out, in), b: (out,).  We store W
    transposed as (in, out) and b as (1, out) for lane broadcast, so the
    kernel computes y = x @ W_t + b  ==  x @ W_pt.T + b_pt.
    """
    dims = [input_size, 1024, 128, 64, 16, 1]
    params = []
    for i in range(len(dims) - 1):
        fan_in, fan_out = dims[i], dims[i + 1]
        key, kw, kb = jax.random.split(key, 3)
        bound = 1.0 / (fan_in ** 0.5)   # PyTorch default Linear init range
        w_t = jax.random.uniform(kw, (fan_in, fan_out), jnp.float32, -bound, bound)
        b = jax.random.uniform(kb, (1, fan_out), jnp.float32, -bound, bound)
        params.append((w_t, b))
    return params


def reference_forward(x, params):
    h = x
    for w, b in params:
        h = h @ w + b
    return h


if __name__ == "__main__":
    key = jax.random.PRNGKey(0)
    key, kx = jax.random.split(key)

    batch = 40           # not a tile multiple -> exercises padding + a 2-step grid
    input_size = 768     # CLIP-embedding-sized input, as the predictor expects

    x = jax.random.normal(kx, (batch, input_size), dtype=jnp.float32)
    params = init_params(key, input_size)
    ref = reference_forward(x, params)

    # Fast path: whole MLP collapsed to one affine map (exact for eval mode).
    out_fast = jax.block_until_ready(
        aesthetic_predictor_forward(x, params, block_b=32, collapse=True))
    assert out_fast.shape == (batch, 1), out_fast.shape
    assert jnp.allclose(out_fast, ref, atol=1e-3, rtol=1e-3), \
        "collapsed path mismatch vs pure-JAX reference"

    # Faithful layered path: bf16 weights, f32 accumulation, weight-stationary grid.
    out_layers = jax.block_until_ready(
        aesthetic_predictor_forward(x, params, block_b=32, collapse=False))
    assert out_layers.shape == (batch, 1), out_layers.shape
    assert jnp.allclose(out_layers, ref, atol=3e-2, rtol=3e-2), \
        "layered path mismatch vs pure-JAX reference"

    print("KERNEL_OK")
</pallas_src>

<mosaic_0001>
module attributes {stable_mosaic.version = 11 : i64} {
  func.func @_affine_kernel(%arg0: i32, %arg1: memref<32x768xf32, #tpu.memory_space<vmem>>, %arg2: memref<768x1xf32, #tpu.memory_space<vmem>>, %arg3: memref<1x1xf32, #tpu.memory_space<vmem>>, %arg4: memref<32x1xf32, #tpu.memory_space<vmem>>) attributes {dimension_semantics = [#tpu.dimension_semantics<parallel>], iteration_bounds = array<i64: 2>, scalar_prefetch = 0 : i64, scratch_operands = 0 : i64, tpu.core_type = #tpu.core_type<tc>, window_params = [{transform_indices = @transform_0, window_bounds = array<i64: 32, 768>}, {pipeline_mode = #tpu.pipeline_mode<synchronous>, transform_indices = @transform_1, window_bounds = array<i64: 768, 1>}, {pipeline_mode = #tpu.pipeline_mode<synchronous>, transform_indices = @transform_2, window_bounds = array<i64: 1, 1>}, {transform_indices = @transform_3, window_bounds = array<i64: 32, 1>}]} {
    %c0 = arith.constant 0 : index
    %c0_0 = arith.constant 0 : index
    %0 = vector.load %arg1[%c0, %c0_0] : memref<32x768xf32, #tpu.memory_space<vmem>>, vector<32x768xf32>
    %c0_1 = arith.constant 0 : index
    %c0_2 = arith.constant 0 : index
    %1 = vector.load %arg2[%c0_1, %c0_2] : memref<768x1xf32, #tpu.memory_space<vmem>>, vector<768x1xf32>
    %cst = arith.constant dense<0.000000e+00> : vector<32x1xf32>
    %2 = tpu.matmul %0, %1, %cst {dimension_numbers = #tpu.dot_dimension_numbers<[1], [0], [0], [1], [0, 0, 1, 1], [], []>} : vector<32x768xf32>, vector<768x1xf32>, vector<32x1xf32> -> vector<32x1xf32>
    %c0_3 = arith.constant 0 : index
    %c0_4 = arith.constant 0 : index
    %3 = vector.load %arg3[%c0_3, %c0_4] : memref<1x1xf32, #tpu.memory_space<vmem>>, vector<1x1xf32>
    %4 = vector.broadcast %3 : vector<1x1xf32> to vector<32x1xf32>
    %5 = arith.addf %2, %4 : vector<32x1xf32>
    %c0_5 = arith.constant 0 : index
    %c0_6 = arith.constant 0 : index
    %6 = vector.load %arg4[%c0_5, %c0_6] : memref<32x1xf32, #tpu.memory_space<vmem>>, vector<32x1xf32>
    tpu.vector_store %arg4[%c0_5, %c0_6], %5 {strides = array<i32>} : memref<32x1xf32, #tpu.memory_space<vmem>>, vector<32x1xf32>,
    return
  }
  func.func @transform_0(%arg0: i32) -> (i32, i32) {
    %c0_i32 = arith.constant 0 : i32
    %c0_i32_0 = arith.constant 0 : i32
    return %arg0, %c0_i32 : i32, i32
  }
  func.func @transform_1(%arg0: i32) -> (i32, i32) {
    %c0_i32 = arith.constant 0 : i32
    %c0_i32_0 = arith.constant 0 : i32
    %c0_i32_1 = arith.constant 0 : i32
    return %c0_i32, %c0_i32_0 : i32, i32
  }
  func.func @transform_2(%arg0: i32) -> (i32, i32) {
    %c0_i32 = arith.constant 0 : i32
    %c0_i32_0 = arith.constant 0 : i32
    %c0_i32_1 = arith.constant 0 : i32
    return %c0_i32, %c0_i32_0 : i32, i32
  }
  func.func @transform_3(%arg0: i32) -> (i32, i32) {
    %c0_i32 = arith.constant 0 : i32
    %c0_i32_0 = arith.constant 0 : i32
    return %arg0, %c0_i32 : i32, i32
  }
}

</mosaic_0001>

<llo_original>
// kernel: tpu_custom_call.1
$region0: #{tpu_custom_call.1}
  #allocation0 [shape = 'u32[]', space=smem, size = 0x4, offset = 0x4, fixed_abs, tag = 'smem constant byte address 0x4 - core index']
  #allocation1 [shape = 'u32[144,128]{1,0:T(1,128)}', space=vmem, size = 0x12000, scoped, tag = 'internal scratch']
  #allocation2 [shape = 'f32[1,1]{1,0:T(1,128)S(1)}', space=vmem, size = 0x200, scoped, tag = 'scoped memory for tpu_custom_call.1']
  %s0 = inlined_call_operand.vmem [shape: f32[64,768], index: 0, kind: input, shape index: {}]
  %s1 = inlined_call_operand.vmem [shape: f32[768,1], index: 1, kind: input, shape index: {}]
  %s2 = inlined_call_operand.<no memory space> [shape: f32[1,1], index: 2, kind: input, shape index: {}]
  %s3 = inlined_call_operand.vmem [shape: f32[64,1], index: 3, kind: output, shape index: {}]
  %s4 = sld [smem:[#allocation0]]
  $region45: #{tpu_custom_call.1} parent=0
    _
  %s6 = ssub.s32 1, %s4
  %s7 = scalar_select 0, %s6, %s4
  %v8 = vstv %s2
  %9 = vst [vmem:[#allocation2] sm:$0x1] %v8
  loop: start=0, step=1, limit=4
  $region2: #{tpu_custom_call.1} parent=0 // loop_pre_header
    _
  $region3: #{tpu_custom_call.1} parent=0 // loop_header
    %s11 = sphi 0, %s15
    %p12 = scmp.ge.s32.totalorder %s11, 4
    %s21 = sphi 0, %s23
    %s24 = sphi 0, %s21
    %s25 = sphi 0, %s24
    %s41 = sphi 0, %s25
    %s45 = sphi 0, %s45
    %s47 = sphi 0, %s45
    %s48 = sphi 0, %s47
    %s62 = sphi 0, %s48
    %s66 = sphi 0, %s66
    %s68 = sphi 0, %s66
    %s69 = sphi 0, %s68
    %s83 = sphi 0, %s69
    %s89 = sphi 0, %s91
    %s92 = sphi 0, %s89
    %s93 = sphi 0, %s92
    %s109 = sphi 0, %s93
  $region4: #{tpu_custom_call.1} parent=0 // loop_header_branch
    %14 = sbr.rel (%p12) target = $region8
  $region5: #{tpu_custom_call.1} parent=0 // loop_body
    %s16 = ssub.s32 %s11, 1
    %s17 = ssub.s32 %s11, 2
    %s18 = sadd.s32 %s11, 1
    %s19 = ssub.s32 %s11, %s18
    %p20 = scmp.eq.s32.totalorder %s19, 0
    %s22 = sadd.s32 %s21, 1
    %s23 = scalar_select %p20, %s21, %s22
    %p26 = pneg %p20
    %p27 = scmp.eq.s32.totalorder %s11, 1
    %p28 = por %p26, %p27
    %p29 = scmp.ne.s32.totalorder %s21, %s24
    %p30 = scmp.eq.s32.totalorder %s11, 0
    %p31 = por %p29, %p30
    %p32 = scmp.ne.s32.totalorder %s21, %s24
    %p33 = scmp.eq.s32.totalorder %s16, 1
    %p34 = por %p32, %p33
    %p35 = scmp.ne.s32.totalorder %s24, %s25
    %p36 = scmp.eq.s32.totalorder %s16, 0
    %p37 = por %p35, %p36
    %p38 = scmp.ne.s32.totalorder %s24, %s25
    %p39 = scmp.eq.s32.totalorder %s17, 1
    %p40 = por %p38, %p39
    %p42 = scmp.ne.s32.totalorder %s25, %s41
    %p43 = scmp.eq.s32.totalorder %s17, 0
    %p44 = por %p42, %p43
    %s46 = sadd.s32 %s45, 1
    %p49 = scmp.eq.s32.totalorder %s11, 1
    %p50 = scmp.ne.s32.totalorder %s45, %s47
    %p51 = scmp.eq.s32.totalorder %s11, 0
    %p52 = por %p50, %p51
    %p53 = scmp.ne.s32.totalorder %s45, %s47
    %p54 = scmp.eq.s32.totalorder %s16, 1
    %p55 = por %p53, %p54
    %p56 = scmp.ne.s32.totalorder %s47, %s48
    %p57 = scmp.eq.s32.totalorder %s16, 0
    %p58 = por %p56, %p57
    %p59 = scmp.ne.s32.totalorder %s47, %s48
    %p60 = scmp.eq.s32.totalorder %s17, 1
    %p61 = por %p59, %p60
    %p63 = scmp.ne.s32.totalorder %s48, %s62
    %p64 = scmp.eq.s32.totalorder %s17, 0
    %p65 = por %p63, %p64
    %s67 = sadd.s32 %s66, 1
    %p70 = scmp.eq.s32.totalorder %s11, 1
    %p71 = scmp.ne.s32.totalorder %s66, %s68
    %p72 = scmp.eq.s32.totalorder %s11, 0
    %p73 = por %p71, %p72
    %p74 = scmp.ne.s32.totalorder %s66, %s68
    %p75 = scmp.eq.s32.totalorder %s16, 1
    %p76 = por %p74, %p75
    %p77 = scmp.ne.s32.totalorder %s68, %s69
    %p78 = scmp.eq.s32.totalorder %s16, 0
    %p79 = por %p77, %p78
    %p80 = scmp.ne.s32.totalorder %s68, %s69
    %p81 = scmp.eq.s32.totalorder %s17, 1
    %p82 = por %p80, %p81
    %p84 = scmp.ne.s32.totalorder %s69, %s83
    %p85 = scmp.eq.s32.totalorder %s17, 0
    %p86 = por %p84, %p85
    %s87 = ssub.s32 %s11, %s18
    %p88 = scmp.eq.s32.totalorder %s87, 0
    %s90 = sadd.s32 %s89, 1
    %s91 = scalar_select %p88, %s89, %s90
    %p94 = pneg %p88
    %p95 = scmp.eq.s32.totalorder %s11, 1
    %p96 = por %p94, %p95
    %p97 = scmp.ne.s32.totalorder %s89, %s92
    %p98 = scmp.eq.s32.totalorder %s11, 0
    %p99 = por %p97, %p98
    %p100 = scmp.ne.s32.totalorder %s89, %s92
    %p101 = scmp.eq.s32.totalorder %s16, 1
    %p102 = por %p100, %p101
    %p103 = scmp.ne.s32.totalorder %s92, %s93
    %p104 = scmp.eq.s32.totalorder %s16, 0
    %p105 = por %p103, %p104
    %p106 = scmp.ne.s32.totalorder %s92, %s93
    %p107 = scmp.eq.s32.totalorder %s17, 1
    %p108 = por %p106, %p107
    %p110 = scmp.ne.s32.totalorder %s93, %s109
    %p111 = scmp.eq.s32.totalorder %s17, 0
    %p112 = por %p110, %p111
    %p113 = scmp.le.s32.totalorder 1, %s11
    %p114 = scmp.lt.s32.totalorder %s11, 3
    %p115 = pnand %p113, %p114
    %p116 = pneg %p115
    // Predicated region
    $region9: #{tpu_custom_call.1} parent=5 // pred_check
      _
    $region10: #{tpu_custom_call.1} parent=5 // pred_check_branch
      %118 = sbr.rel (%p115) target = $region12
    $region11: #{tpu_custom_call.1} parent=5 // pred_region
      %s119 = ssub.s32 %s11, 1
      // Predicated region
      $region13: #{tpu_custom_call.1} parent=11 // pred_check
        %p120 = pneg %p58
      $region14: #{tpu_custom_call.1} parent=11 // pred_check_branch
        %122 = sbr.rel (%p120) target = $region16
      $region15: #{tpu_custom_call.1} parent=11 // pred_region
        _
      $region16: #{tpu_custom_call.1} parent=11 // pred_fallthru
        _
      // Predicated region
      $region17: #{tpu_custom_call.1} parent=11 // pred_check
        %p123 = pneg %p79
      $region18: #{tpu_custom_call.1} parent=11 // pred_check_branch
        %125 = sbr.rel (%p123) target = $region20
      $region19: #{tpu_custom_call.1} parent=11 // pred_region
        _
      $region20: #{tpu_custom_call.1} parent=11 // pred_fallthru
        _
    $region12: #{tpu_custom_call.1} parent=5 // pred_fallthru
      _
    %p126 = scmp.lt.s32.totalorder %s11, 2
    // Predicated region
    $region21: #{tpu_custom_call.1} parent=5 // pred_check
      %p127 = pneg %p126
    $region22: #{tpu_custom_call.1} parent=5 // pred_check_branch
      %129 = sbr.rel (%p127) target = $region24
    $region23: #{tpu_custom_call.1} parent=5 // pred_region
      // Predicated region
      $region25: #{tpu_custom_call.1} parent=23 // pred_check
        %p130 = pneg %p31
      $region26: #{tpu_custom_call.1} parent=23 // pred_check_branch
        %132 = sbr.rel (%p130) target = $region28
      $region27: #{tpu_custom_call.1} parent=23 // pred_region
        %s133 = smul.u32 4, %s11
        %p134 = scmp.lt.s32.totalorder %s133, 7
        %s135 = scalar_select %p134, %s133, 7
        %s136 = smul.addr %s135, 6
        %s137 = smul.addr %s136, 8
        %s138 = scalar_lea.vmem %s0, %s137
        %s139 = smul.u32 4, %s11
      $region28: #{tpu_custom_call.1} parent=23 // pred_fallthru
        _
    $region24: #{tpu_custom_call.1} parent=5 // pred_fallthru
      _
    %p140 = scmp.le.s32.totalorder 1, %s11
    %p141 = scmp.lt.s32.totalorder %s11, 3
    %p142 = pnand %p140, %p141
    %p143 = pneg %p142
    // Predicated region
    $region29: #{tpu_custom_call.1} parent=5 // pred_check
      _
    $region30: #{tpu_custom_call.1} parent=5 // pred_check_branch
      %145 = sbr.rel (%p142) target = $region32
    $region31: #{tpu_custom_call.1} parent=5 // pred_region
      %s146 = ssub.s32 %s11, 1
      %s147 = smul.u32 4, %s16
      %p148 = scmp.lt.s32.totalorder %s147, 7
      %s149 = scalar_select %p148, %s147, 7
      %s150 = smul.addr %s149, 6
      %s151 = smul.addr %s150, 8
      %s152 = scalar_lea.vmem %s0, %s151
      %p153 = pneg %p37
      %p154 = pneg %p34
      %p155 = pneg %p58
      %p156 = pneg %p55
      %p157 = pneg %p79
      %p158 = pneg %p76
      %p159 = pneg %p105
      %p160 = pneg %p102
      %s161 = smul.u32 4, %s16
      %p162 = scmp.lt.s32.totalorder %s161, 7
      %s163 = scalar_select %p162, %s161, 7
      %s164 = smul.addr %s163, 8
      %s165 = scalar_lea.vmem %s3, %s164
      %s166 = smul.u32 4, %s16
      %p167 = scmp.lt.s32.totalorder %s166, 7
      %s168 = scalar_select %p167, %s166, 7
      %s169 = smul.addr %s168, 6
      %s170 = smul.addr %s169, 8
      %s171 = scalar_lea.vmem %s0, %s170
      %s172 = smul.u32 4, %s16
      %s173 = smul.u32 4, %s16
      %p174 = scmp.lt.s32.totalorder %s173, 7
      %s175 = scalar_select %p174, %s173, 7
      %s176 = smul.addr %s175, 8
      %s177 = scalar_lea.vmem %s3, %s176
      %s178 = smul.u32 4, %s16
      %v179 = vld [vmem:[%s171] sm:$0xff]
      %v180 = vld [vmem:[%s171 + $0x8] sm:$0xff]
      %v181 = vld [vmem:[%s171 + $0x10] sm:$0xff]
      %v182 = vld [vmem:[%s171 + $0x18] sm:$0xff]
      %v183 = vld [vmem:[%s171 + $0x20] sm:$0xff]
      %v184 = vld [vmem:[%s171 + $0x28] sm:$0xff]
      %v185 = vld [vmem:[%s171 + $0x30] sm:$0xff]
      %v186 = vld [vmem:[%s171 + $0x38] sm:$0xff]
      %v187 = vld [vmem:[%s171 + $0x40] sm:$0xff]
      %v188 = vld [vmem:[%s171 + $0x48] sm:$0xff]
      %v189 = vld [vmem:[%s171 + $0x50] sm:$0xff]
      %v190 = vld [vmem:[%s171 + $0x58] sm:$0xff]
      %v191 = vld [vmem:[%s171 + $0x60] sm:$0xff]
      %v192 = vld [vmem:[%s171 + $0x68] sm:$0xff]
      %v193 = vld [vmem:[%s171 + $0x70] sm:$0xff]
      %v194 = vld [vmem:[%s171 + $0x78] sm:$0xff]
      %v195 = vld [vmem:[%s171 + $0x80] sm:$0xff]
      %v196 = vld [vmem:[%s171 + $0x88] sm:$0xff]
      %v197 = vld [vmem:[%s171 + $0x90] sm:$0xff]
      %v198 = vld [vmem:[%s171 + $0x98] sm:$0xff]
      %v199 = vld [vmem:[%s171 + $0xa0] sm:$0xff]
      %v200 = vld [vmem:[%s171 + $0xa8] sm:$0xff]
      %v201 = vld [vmem:[%s171 + $0xb0] sm:$0xff]
      %v202 = vld [vmem:[%s171 + $0xb8] sm:$0xff]
      %v203 = vld [vmem:[%s1] sm:$0xff]
      %v204 = vld [vmem:[%s1 + $0x8] sm:$0xff]
      %v205 = vld [vmem:[%s1 + $0x10] sm:$0xff]
      %v206 = vld [vmem:[%s1 + $0x18] sm:$0xff]
      %v207 = vld [vmem:[%s1 + $0x20] sm:$0xff]
      %v208 = vld [vmem:[%s1 + $0x28] sm:$0xff]
      %v209 = vld [vmem:[%s1 + $0x30] sm:$0xff]
      %v210 = vld [vmem:[%s1 + $0x38] sm:$0xff]
      %v211 = vld [vmem:[%s1 + $0x40] sm:$0xff]
      %v212 = vld [vmem:[%s1 + $0x48] sm:$0xff]
      %v213 = vld [vmem:[%s1 + $0x50] sm:$0xff]
      %v214 = vld [vmem:[%s1 + $0x58] sm:$0xff]
      %v215 = vld [vmem:[%s1 + $0x60] sm:$0xff]
      %v216 = vld [vmem:[%s1 + $0x68] sm:$0xff]
      %v217 = vld [vmem:[%s1 + $0x70] sm:$0xff]
      %v218 = vld [vmem:[%s1 + $0x78] sm:$0xff]
      %v219 = vld [vmem:[%s1 + $0x80] sm:$0xff]
      %v220 = vld [vmem:[%s1 + $0x88] sm:$0xff]
      %v221 = vld [vmem:[%s1 + $0x90] sm:$0xff]
      %v222 = vld [vmem:[%s1 + $0x98] sm:$0xff]
      %v223 = vld [vmem:[%s1 + $0xa0] sm:$0xff]
      %v224 = vld [vmem:[%s1 + $0xa8] sm:$0xff]
      %v225 = vld [vmem:[%s1 + $0xb0] sm:$0xff]
      %v226 = vld [vmem:[%s1 + $0xb8] sm:$0xff]
      %v227 = vld [vmem:[%s1 + $0xc0] sm:$0xff]
      %v228 = vld [vmem:[%s1 + $0xc8] sm:$0xff]
      %v229 = vld [vmem:[%s1 + $0xd0] sm:$0xff]
      %v230 = vld [vmem:[%s1 + $0xd8] sm:$0xff]
      %v231 = vld [vmem:[%s1 + $0xe0] sm:$0xff]
      %v232 = vld [vmem:[%s1 + $0xe8] sm:$0xff]
      %v233 = vld [vmem:[%s1 + $0xf0] sm:$0xff]
      %v234 = vld [vmem:[%s1 + $0xf8] sm:$0xff]
      %v235 = vld [vmem:[%s1 + $0x100] sm:$0xff]
      %v236 = vld [vmem:[%s1 + $0x108] sm:$0xff]
      %v237 = vld [vmem:[%s1 + $0x110] sm:$0xff]
      %v238 = vld [vmem:[%s1 + $0x118] sm:$0xff]
      %v239 = vld [vmem:[%s1 + $0x120] sm:$0xff]
      %v240 = vld [vmem:[%s1 + $0x128] sm:$0xff]
      %v241 = vld [vmem:[%s1 + $0x130] sm:$0xff]
      %v242 = vld [vmem:[%s1 + $0x138] sm:$0xff]
      %v243 = vld [vmem:[%s1 + $0x140] sm:$0xff]
      %v244 = vld [vmem:[%s1 + $0x148] sm:$0xff]
      %v245 = vld [vmem:[%s1 + $0x150] sm:$0xff]
      %v246 = vld [vmem:[%s1 + $0x158] sm:$0xff]
      %v247 = vld [vmem:[%s1 + $0x160] sm:$0xff]
      %v248 = vld [vmem:[%s1 + $0x168] sm:$0xff]
      %v249 = vld [vmem:[%s1 + $0x170] sm:$0xff]
      %v250 = vld [vmem:[%s1 + $0x178] sm:$0xff]
      %v251 = vld [vmem:[%s1 + $0x180] sm:$0xff]
      %v252 = vld [vmem:[%s1 + $0x188] sm:$0xff]
      %v253 = vld [vmem:[%s1 + $0x190] sm:$0xff]
      %v254 = vld [vmem:[%s1 + $0x198] sm:$0xff]
      %v255 = vld [vmem:[%s1 + $0x1a0] sm:$0xff]
      %v256 = vld [vmem:[%s1 + $0x1a8] sm:$0xff]
      %v257 = vld [vmem:[%s1 + $0x1b0] sm:$0xff]
      %v258 = vld [vmem:[%s1 + $0x1b8] sm:$0xff]
      %v259 = vld [vmem:[%s1 + $0x1c0] sm:$0xff]
      %v260 = vld [vmem:[%s1 + $0x1c8] sm:$0xff]
      %v261 = vld [vmem:[%s1 + $0x1d0] sm:$0xff]
      %v262 = vld [vmem:[%s1 + $0x1d8] sm:$0xff]
      %v263 = vld [vmem:[%s1 + $0x1e0] sm:$0xff]
      %v264 = vld [vmem:[%s1 + $0x1e8] sm:$0xff]
      %v265 = vld [vmem:[%s1 + $0x1f0] sm:$0xff]
      %v266 = vld [vmem:[%s1 + $0x1f8] sm:$0xff]
      %v267 = vld [vmem:[%s1 + $0x200] sm:$0xff]
      %v268 = vld [vmem:[%s1 + $0x208] sm:$0xff]
      %v269 = vld [vmem:[%s1 + $0x210] sm:$0xff]
      %v270 = vld [vmem:[%s1 + $0x218] sm:$0xff]
      %v271 = vld [vmem:[%s1 + $0x220] sm:$0xff]
      %v272 = vld [vmem:[%s1 + $0x228] sm:$0xff]
      %v273 = vld [vmem:[%s1 + $0x230] sm:$0xff]
      %v274 = vld [vmem:[%s1 + $0x238] sm:$0xff]
      %v275 = vld [vmem:[%s1 + $0x240] sm:$0xff]
      %v276 = vld [vmem:[%s1 + $0x248] sm:$0xff]
      %v277 = vld [vmem:[%s1 + $0x250] sm:$0xff]
      %v278 = vld [vmem:[%s1 + $0x258] sm:$0xff]
      %v279 = vld [vmem:[%s1 + $0x260] sm:$0xff]
      %v280 = vld [vmem:[%s1 + $0x268] sm:$0xff]
      %v281 = vld [vmem:[%s1 + $0x270] sm:$0xff]
      %v282 = vld [vmem:[%s1 + $0x278] sm:$0xff]
      %v283 = vld [vmem:[%s1 + $0x280] sm:$0xff]
      %v284 = vld [vmem:[%s1 + $0x288] sm:$0xff]
      %v285 = vld [vmem:[%s1 + $0x290] sm:$0xff]
      %v286 = vld [vmem:[%s1 + $0x298] sm:$0xff]
      %v287 = vld [vmem:[%s1 + $0x2a0] sm:$0xff]
      %v288 = vld [vmem:[%s1 + $0x2a8] sm:$0xff]
      %v289 = vld [vmem:[%s1 + $0x2b0] sm:$0xff]
      %v290 = vld [vmem:[%s1 + $0x2b8] sm:$0xff]
      %v291 = vld [vmem:[%s1 + $0x2c0] sm:$0xff]
      %v292 = vld [vmem:[%s1 + $0x2c8] sm:$0xff]
      %v293 = vld [vmem:[%s1 + $0x2d0] sm:$0xff]
      %v294 = vld [vmem:[%s1 + $0x2d8] sm:$0xff]
      %v295 = vld [vmem:[%s1 + $0x2e0] sm:$0xff]
      %v296 = vld [vmem:[%s1 + $0x2e8] sm:$0xff]
      %v297 = vld [vmem:[%s1 + $0x2f0] sm:$0xff]
      %v298 = vld [vmem:[%s1 + $0x2f8] sm:$0xff]
      %v299 = vld [vmem:[#allocation2] sm:$0x1]
      %v301 = vlaneseq
      %v302 = vshrl.u32 %v301, 7
      %v303 = vsub.s32 0, %v302
      %v304 = vrot.slane %v299, %v303
      %306 = vmatprep.subr.mxu0 0.0
      %307 = vmatpush1.msra.mxu0 %v203
      %308 = vmatprep.subr.mxu0 0.0
      %309 = vmatpush1.msra.mxu0 %v204
      %310 = vmatprep.subr.mxu0 0.0
      %311 = vmatpush1.msra.mxu0 %v205
      %312 = vmatprep.subr.mxu0 0.0
      %313 = vmatpush1.msra.mxu0 %v206
      %314 = vmatprep.subr.mxu0 0.0
      %315 = vmatpush1.msra.mxu0 %v207
      %316 = vmatprep.subr.mxu0 0.0
      %317 = vmatpush1.msra.mxu0 %v208
      %318 = vmatprep.subr.mxu0 0.0
      %319 = vmatpush1.msra.mxu0 %v209
      %320 = vmatprep.subr.mxu0 0.0
      %321 = vmatpush1.msra.mxu0 %v210
      %322 = vmatprep.subr.mxu0 0.0
      %323 = vmatpush1.msra.mxu0 %v211
      %324 = vmatprep.subr.mxu0 0.0
      %325 = vmatpush1.msra.mxu0 %v212
      %326 = vmatprep.subr.mxu0 0.0
      %327 = vmatpush1.msra.mxu0 %v213
      %328 = vmatprep.subr.mxu0 0.0
      %329 = vmatpush1.msra.mxu0 %v214
      %330 = vmatprep.subr.mxu0 0.0
      %331 = vmatpush1.msra.mxu0 %v215
      %332 = vmatprep.subr.mxu0 0.0
      %333 = vmatpush1.msra.mxu0 %v216
      %334 = vmatprep.subr.mxu0 0.0
      %335 = vmatpush1.msra.mxu0 %v217
      %336 = vmatprep.subr.mxu0 0.0
      %337 = vmatpush1.msra.mxu0 %v218
      %338 = vmatprep.subr.mxu0 0.0
      %339 = vmatpush1.msra.mxu0 %v219
      %340 = vmatprep.subr.mxu0 0.0
      %341 = vmatpush1.msra.mxu0 %v220
      %342 = vmatprep.subr.mxu0 0.0
      %343 = vmatpush1.msra.mxu0 %v221
      %344 = vmatprep.subr.mxu0 0.0
      %345 = vmatpush1.msra.mxu0 %v222
      %346 = vmatprep.subr.mxu0 0.0
      %347 = vmatpush1.msra.mxu0 %v223
      %348 = vmatprep.subr.mxu0 0.0
      %349 = vmatpush1.msra.mxu0 %v224
      %350 = vmatprep.subr.mxu0 0.0
      %351 = vmatpush1.msra.mxu0 %v225
      %352 = vmatprep.subr.mxu0 0.0
      %353 = vmatpush1.msra.mxu0 %v226
      %354 = vmatprep.subr.mxu0 0.0
      %355 = vmatpush1.msra.mxu0 %v227
      %356 = vmatprep.subr.mxu0 0.0
      %357 = vmatpush1.msra.mxu0 %v228
      %358 = vmatprep.subr.mxu0 0.0
      %359 = vmatpush1.msra.mxu0 %v229
      %360 = vmatprep.subr.mxu0 0.0
      %361 = vmatpush1.msra.mxu0 %v230
      %362 = vmatprep.subr.mxu0 0.0
      %363 = vmatpush1.msra.mxu0 %v231
      %364 = vmatprep.subr.mxu0 0.0
      %365 = vmatpush1.msra.mxu0 %v232
      %366 = vmatprep.subr.mxu0 0.0
      %367 = vmatpush1.msra.mxu0 %v233
      %368 = vmatprep.subr.mxu0 0.0
      %369 = vmatpush1.msra.mxu0 %v234
      %370 = vmatprep.mubr.f32.mxu0 %v180
      %371 = vmatmul.mubr.f32.gmra.mrb[0].mxu0 %v179
      %v372 = vpop.f32.mrb[0].mxu0
      %v373 = vadd.f32 %v304, %v372
      %v374 = vpop.f32.mrb[0].mxu0
      %375 = vmatprep.mubr.f32.mxu0 %v186
      %376 = vmatmul.mubr.f32.gmra.mrb[0].mxu0 %v185
      %v377 = vpop.f32.mrb[0].mxu0
      %v378 = vadd.f32 %v304, %v377
      %v379 = vpop.f32.mrb[0].mxu0
      %380 = vmatprep.mubr.f32.mxu0 %v192
      %381 = vmatmul.mubr.f32.gmra.mrb[0].mxu0 %v191
      %v382 = vpop.f32.mrb[0].mxu0
      %v383 = vadd.f32 %v304, %v382
      %v384 = vpop.f32.mrb[0].mxu0
      %385 = vmatprep.mubr.f32.mxu0 %v198
      %386 = vmatmul.mubr.f32.gmra.mrb[0].mxu0 %v197
      %v387 = vpop.f32.mrb[0].mxu0
      %v388 = vadd.f32 %v304, %v387
      %v389 = vpop.f32.mrb[0].mxu0
      %390 = vdwg.mxu0
      %391 = vmatprep.subr.mxu0 0.0
      %392 = vmatpush1.msra.mxu0 %v235
      %393 = vmatprep.subr.mxu0 0.0
      %394 = vmatpush1.msra.mxu0 %v236
      %395 = vmatprep.subr.mxu0 0.0
      %396 = vmatpush1.msra.mxu0 %v237
      %397 = vmatprep.subr.mxu0 0.0
      %398 = vmatpush1.msra.mxu0 %v238
      %399 = vmatprep.subr.mxu0 0.0
      %400 = vmatpush1.msra.mxu0 %v239
      %401 = vmatprep.subr.mxu0 0.0
      %402 = vmatpush1.msra.mxu0 %v240
      %403 = vmatprep.subr.mxu0 0.0
      %404 = vmatpush1.msra.mxu0 %v241
      %405 = vmatprep.subr.mxu0 0.0
      %406 = vmatpush1.msra.mxu0 %v242
      %407 = vmatprep.subr.mxu0 0.0
      %408 = vmatpush1.msra.mxu0 %v243
      %409 = vmatprep.subr.mxu0 0.0
      %410 = vmatpush1.msra.mxu0 %v244
      %411 = vmatprep.subr.mxu0 0.0
      %412 = vmatpush1.msra.mxu0 %v245
      %413 = vmatprep.subr.mxu0 0.0
      %414 = vmatpush1.msra.mxu0 %v246
      %415 = vmatprep.subr.mxu0 0.0
      %416 = vmatpush1.msra.mxu0 %v247
      %417 = vmatprep.subr.mxu0 0.0
      %418 = vmatpush1.msra.mxu0 %v248
      %419 = vmatprep.subr.mxu0 0.0
      %420 = vmatpush1.msra.mxu0 %v249
      %421 = vmatprep.subr.mxu0 0.0
      %422 = vmatpush1.msra.mxu0 %v250
      %423 = vmatprep.subr.mxu0 0.0
      %424 = vmatpush1.msra.mxu0 %v251
      %425 = vmatprep.subr.mxu0 0.0
      %426 = vmatpush1.msra.mxu0 %v252
      %427 = vmatprep.subr.mxu0 0.0
      %428 = vmatpush1.msra.mxu0 %v253
      %429 = vmatprep.subr.mxu0 0.0
      %430 = vmatpush1.msra.mxu0 %v254
      %431 = vmatprep.subr.mxu0 0.0
      %432 = vmatpush1.msra.mxu0 %v255
      %433 = vmatprep.subr.mxu0 0.0
      %434 = vmatpush1.msra.mxu0 %v256
      %435 = vmatprep.subr.mxu0 0.0
      %436 = vmatpush1.msra.mxu0 %v257
      %437 = vmatprep.subr.mxu0 0.0
      %438 = vmatpush1.msra.mxu0 %v258
      %439 = vmatprep.subr.mxu0 0.0
      %440 = vmatpush1.msra.mxu0 %v259
      %441 = vmatprep.subr.mxu0 0.0
      %442 = vmatpush1.msra.mxu0 %v260
      %443 = vmatprep.subr.mxu0 0.0
      %444 = vmatpush1.msra.mxu0 %v261
      %445 = vmatprep.subr.mxu0 0.0
      %446 = vmatpush1.msra.mxu0 %v262
      %447 = vmatprep.subr.mxu0 0.0
      %448 = vmatpush1.msra.mxu0 %v263
      %449 = vmatprep.subr.mxu0 0.0
      %450 = vmatpush1.msra.mxu0 %v264
      %451 = vmatprep.subr.mxu0 0.0
      %452 = vmatpush1.msra.mxu0 %v265
      %453 = vmatprep.subr.mxu0 0.0
      %454 = vmatpush1.msra.mxu0 %v266
      %455 = vmatprep.mubr.f32.mxu0 %v182
      %456 = vmatmul.mubr.f32.gmra.mrb[0].mxu0 %v181
      %v457 = vpop.f32.mrb[0].mxu0
      %v458 = vadd.f32 %v373, %v457
      %v459 = vpop.f32.mrb[0].mxu0
      %460 = vmatprep.mubr.f32.mxu0 %v188
      %461 = vmatmul.mubr.f32.gmra.mrb[0].mxu0 %v187
      %v462 = vpop.f32.mrb[0].mxu0
      %v463 = vadd.f32 %v378, %v462
      %v464 = vpop.f32.mrb[0].mxu0
      %465 = vmatprep.mubr.f32.mxu0 %v194
      %466 = vmatmul.mubr.f32.gmra.mrb[0].mxu0 %v193
      %v467 = vpop.f32.mrb[0].mxu0
      %v468 = vadd.f32 %v383, %v467
      %v469 = vpop.f32.mrb[0].mxu0
      %470 = vmatprep.mubr.f32.mxu0 %v200
      %471 = vmatmul.mubr.f32.gmra.mrb[0].mxu0 %v199
      %v472 = vpop.f32.mrb[0].mxu0
      %v473 = vadd.f32 %v388, %v472
      %v474 = vpop.f32.mrb[0].mxu0
      %475 = vdwg.mxu0
      %476 = vmatprep.subr.mxu0 0.0
      %477 = vmatpush1.msra.mxu0 %v267
      %478 = vmatprep.subr.mxu0 0.0
      %479 = vmatpush1.msra.mxu0 %v268
      %480 = vmatprep.subr.mxu0 0.0
      %481 = vmatpush1.msra.mxu0 %v269
      %482 = vmatprep.subr.mxu0 0.0
      %483 = vmatpush1.msra.mxu0 %v270
      %484 = vmatprep.subr.mxu0 0.0
      %485 = vmatpush1.msra.mxu0 %v271
      %486 = vmatprep.subr.mxu0 0.0
      %487 = vmatpush1.msra.mxu0 %v272
      %488 = vmatprep.subr.mxu0 0.0
      %489 = vmatpush1.msra.mxu0 %v273
      %490 = vmatprep.subr.mxu0 0.0
      %491 = vmatpush1.msra.mxu0 %v274
      %492 = vmatprep.subr.mxu0 0.0
      %493 = vmatpush1.msra.mxu0 %v275
      %494 = vmatprep.subr.mxu0 0.0
      %495 = vmatpush1.msra.mxu0 %v276
      %496 = vmatprep.subr.mxu0 0.0
      %497 = vmatpush1.msra.mxu0 %v277
      %498 = vmatprep.subr.mxu0 0.0
      %499 = vmatpush1.msra.mxu0 %v278
      %500 = vmatprep.subr.mxu0 0.0
      %501 = vmatpush1.msra.mxu0 %v279
      %502 = vmatprep.subr.mxu0 0.0
      %503 = vmatpush1.msra.mxu0 %v280
      %504 = vmatprep.subr.mxu0 0.0
      %505 = vmatpush1.msra.mxu0 %v281
      %506 = vmatprep.subr.mxu0 0.0
      %507 = vmatpush1.msra.mxu0 %v282
      %508 = vmatprep.subr.mxu0 0.0
      %509 = vmatpush1.msra.mxu0 %v283
      %510 = vmatprep.subr.mxu0 0.0
      %511 = vmatpush1.msra.mxu0 %v284
      %512 = vmatprep.subr.mxu0 0.0
      %513 = vmatpush1.msra.mxu0 %v285
      %514 = vmatprep.subr.mxu0 0.0
      %515 = vmatpush1.msra.mxu0 %v286
      %516 = vmatprep.subr.mxu0 0.0
      %517 = vmatpush1.msra.mxu0 %v287
      %518 = vmatprep.subr.mxu0 0.0
      %519 = vmatpush1.msra.mxu0 %v288
      %520 = vmatprep.subr.mxu0 0.0
      %521 = vmatpush1.msra.mxu0 %v289
      %522 = vmatprep.subr.mxu0 0.0
      %523 = vmatpush1.msra.mxu0 %v290
      %524 = vmatprep.subr.mxu0 0.0
      %525 = vmatpush1.msra.mxu0 %v291
      %526 = vmatprep.subr.mxu0 0.0
      %527 = vmatpush1.msra.mxu0 %v292
      %528 = vmatprep.subr.mxu0 0.0
      %529 = vmatpush1.msra.mxu0 %v293
      %530 = vmatprep.subr.mxu0 0.0
      %531 = vmatpush1.msra.mxu0 %v294
      %532 = vmatprep.subr.mxu0 0.0
      %533 = vmatpush1.msra.mxu0 %v295
      %534 = vmatprep.subr.mxu0 0.0
      %535 = vmatpush1.msra.mxu0 %v296
      %536 = vmatprep.subr.mxu0 0.0
      %537 = vmatpush1.msra.mxu0 %v297
      %538 = vmatprep.subr.mxu0 0.0
      %539 = vmatpush1.msra.mxu0 %v298
      %540 = vmatprep.mubr.f32.mxu0 %v184
      %541 = vmatmul.mubr.f32.gmra.mrb[0].mxu0 %v183
      %v542 = vpop.f32.mrb[0].mxu0
      %v543 = vadd.f32 %v458, %v542
      %v544 = vpop.f32.mrb[0].mxu0
      %545 = vmatprep.mubr.f32.mxu0 %v190
      %546 = vmatmul.mubr.f32.gmra.mrb[0].mxu0 %v189
      %v547 = vpop.f32.mrb[0].mxu0
      %v548 = vadd.f32 %v463, %v547
      %v549 = vpop.f32.mrb[0].mxu0
      %550 = vmatprep.mubr.f32.mxu0 %v196
      %551 = vmatmul.mubr.f32.gmra.mrb[0].mxu0 %v195
      %v552 = vpop.f32.mrb[0].mxu0
      %v553 = vadd.f32 %v468, %v552
      %v554 = vpop.f32.mrb[0].mxu0
      %555 = vmatprep.mubr.f32.mxu0 %v202
      %556 = vmatmul.mubr.f32.gmra.mrb[0].mxu0 %v201
      %v557 = vpop.f32.mrb[0].mxu0
      %v558 = vadd.f32 %v473, %v557
      %v559 = vpop.f32.mrb[0].mxu0
      %560 = vdwg.mxu0
      %vm561 = vcmask 7168
      %562 = vst.msk [vmem:[%s177] sm:$0xff] %vm561, %v543
      %563 = vst.msk [vmem:[%s177 + $0x8] sm:$0xff] %vm561, %v548
      %564 = vst.msk [vmem:[%s177 + $0x10] sm:$0xff] %vm561, %v553
      %565 = vst.msk [vmem:[%s177 + $0x18] sm:$0xff] %vm561, %v558
      %s566 = smul.u32 4, %s16
      %p567 = scmp.lt.s32.totalorder %s566, 7
      %s568 = scalar_select %p567, %s566, 7
      %s569 = smul.addr %s568, 8
      %s570 = scalar_lea.vmem %s3, %s569
      // Predicated region
      $region33: #{tpu_custom_call.1} parent=31 // pred_check
        %p571 = pneg %p102
      $region34: #{tpu_custom_call.1} parent=31 // pred_check_branch
        %573 = sbr.rel (%p571) target = $region36
      $region35: #{tpu_custom_call.1} parent=31 // pred_region
        %s574 = smul.u32 4, %s16
      $region36: #{tpu_custom_call.1} parent=31 // pred_fallthru
        _
    $region32: #{tpu_custom_call.1} parent=5 // pred_fallthru
      _
    %p575 = scmp.le.s32.totalorder 2, %s11
    // Predicated region
    $region37: #{tpu_custom_call.1} parent=5 // pred_check
      %p576 = pneg %p575
    $region38: #{tpu_custom_call.1} parent=5 // pred_check_branch
      %578 = sbr.rel (%p576) target = $region40
    $region39: #{tpu_custom_call.1} parent=5 // pred_region
      %s579 = ssub.s32 %s11, 2
      // Predicated region
      $region41: #{tpu_custom_call.1} parent=39 // pred_check
        %p580 = pneg %p108
      $region42: #{tpu_custom_call.1} parent=39 // pred_check_branch
        %582 = sbr.rel (%p580) target = $region44
      $region43: #{tpu_custom_call.1} parent=39 // pred_region
        %s583 = smul.u32 4, %s17
        %p584 = scmp.lt.s32.totalorder %s583, 7
        %s585 = scalar_select %p584, %s583, 7
        %s586 = smul.addr %s585, 8
        %s587 = scalar_lea.vmem %s3, %s586
      $region44: #{tpu_custom_call.1} parent=39 // pred_fallthru
        _
    $region40: #{tpu_custom_call.1} parent=5 // pred_fallthru
      _
  $region6: #{tpu_custom_call.1} parent=0 // loop_footer
    %s15 = sadd.s32 1, %s11
  $region7: #{tpu_custom_call.1} parent=0 // loop_footer_branch
    %10 = sbr.rel target = $region3
  $region8: #{tpu_custom_call.1} parent=0 // loop_exit
    _

</llo_original>
